<compile_context>
chip_gen: v5e
topology: v5e:2x2
jax: 0.10.0
libtpu: 0.0.40
codegen_flags: <defaults>
</compile_context>

<pallas_src>
import math
import jax
import jax.numpy as jnp
from jax.experimental import pallas as pl
from jax.experimental.pallas import tpu as pltpu  # noqa: F401

# ----------------------- ModelArgs (small, synthetic) -----------------------
B = 2                      # batch
S = 8                      # sequence length
D = 32                     # model dim
N_HEADS = 4
HEAD_DIM = D // N_HEADS    # 8
MULTIPLE_OF = 32
_H0 = int(2 * (4 * D) / 3)
HIDDEN = MULTIPLE_OF * ((_H0 + MULTIPLE_OF - 1) // MULTIPLE_OF)  # 96
HIDDEN_PAD = 128           # lane-aligned padded FFN width (zeros, exact)
EPS = 1e-5
BS = B * S


# ------------------------------ Pallas kernel -------------------------------
def transformer_block_kernel(
    x_ref, cos_ref, sin_ref,            # (BS, D) activations / RoPE tables
    anw_ref, fnw_ref,                   # (1, D) norm weights
    wqkvr_ref,                          # (D, 5D)  [wq | wk | wv | wq_rot | wk_rot]
    wo_ref,                             # (D, D)
    w13_ref,                            # (D, 2*HIDDEN_PAD)  [w1_pad | w3_pad]
    w2_ref,                             # (HIDDEN_PAD, D)
    out_ref):                           # (BS, D)
  f32 = jnp.float32
  x = x_ref[...]                        # (BS, D)
  cosf = cos_ref[...]
  sinf = sin_ref[...]

  def rmsnorm(v, w):
    ms = jnp.mean(v * v, axis=-1, keepdims=True)
    return v * jax.lax.rsqrt(ms + EPS) * w

  # ---------------- attention ----------------
  xn = rmsnorm(x, anw_ref[...])
  # One wide MXU push for q, k, v and the pre-rotated q_rot, k_rot.
  qkvr = jnp.dot(xn, wqkvr_ref[...], preferred_element_type=f32)   # (BS, 5D)
  q  = qkvr[:, 0 * D:1 * D]
  k  = qkvr[:, 1 * D:2 * D]
  v  = qkvr[:, 2 * D:3 * D]
  qr = qkvr[:, 3 * D:4 * D]
  kr = qkvr[:, 4 * D:5 * D]

  # RoPE (interleaved pairs): pure elementwise, rotation already baked into qr/kr.
  q = q * cosf + qr * sinf
  k = k * cosf + kr * sinf

  # Per-batch / per-head structure only for the score / PV step.
  q3 = q.reshape(B, S, D)
  k3 = k.reshape(B, S, D)
  v3 = v.reshape(B, S, D)

  row = jax.lax.broadcasted_iota(jnp.int32, (S, S), 0)
  col = jax.lax.broadcasted_iota(jnp.int32, (S, S), 1)
  causal_bias = jnp.where(col > row, jnp.float32(-1e30), jnp.float32(0.0))

  scale = jnp.float32(1.0 / math.sqrt(HEAD_DIM))
  wo = wo_ref[...]
  attn = jnp.zeros((BS, D), f32)        # running sum over heads (wo folded in)
  for h in range(N_HEADS):              # static unrolled loop over heads
    lo = h * HEAD_DIM
    qh = q3[:, :, lo:lo + HEAD_DIM]     # (B, S, HD)
    kh = k3[:, :, lo:lo + HEAD_DIM]
    vh = v3[:, :, lo:lo + HEAD_DIM]
    sc = jnp.einsum("bqd,bkd->bqk", qh, kh,
                    preferred_element_type=f32) * scale
    sc = sc + causal_bias[None, :, :]
    m = jnp.max(sc, axis=-1, keepdims=True)
    p = jnp.exp(sc - m)
    p = p * pl.reciprocal(jnp.sum(p, axis=-1, keepdims=True), approx=True)
    pv = jnp.einsum("bqk,bkd->bqd", p, vh,
                    preferred_element_type=f32)           # (B, S, HD)
    attn = attn + jnp.dot(pv.reshape(BS, HEAD_DIM),
                          wo[lo:lo + HEAD_DIM, :],
                          preferred_element_type=f32)     # (BS, D)

  h1 = x + attn                                            # first residual

  # ---------------- feed forward (SwiGLU) ----------------
  hn = rmsnorm(h1, fnw_ref[...])
  ag = jnp.dot(hn, w13_ref[...], preferred_element_type=f32)   # (BS, 2*HP)
  a = ag[:, :HIDDEN_PAD]
  g = ag[:, HIDDEN_PAD:]
  silu = a * pl.reciprocal(1.0 + jnp.exp(-a), approx=True)
  ff = jnp.dot(silu * g, w2_ref[...], preferred_element_type=f32)
  # TODO(synk): dropout omitted (dropout=0.0 / eval semantics)

  out_ref[...] = h1 + ff                                   # second residual


# ------------------------------- wrapper -------------------------------------
def transformer_block(x, freqs_cos, freqs_sin, params):
  # --- one-time glue (outside kernel): RoPE table expansion + weight fusion ---
  # (S, HEAD_DIM//2) -> (S, D): repeat per interleaved pair, tile per head,
  # then tile over batch so tables match the flattened (B*S, D) activations.
  cos_full = jnp.tile(jnp.repeat(freqs_cos, 2, axis=-1), (1, N_HEADS))
  sin_full = jnp.tile(jnp.repeat(freqs_sin, 2, axis=-1), (1, N_HEADS))
  cos_bs = jnp.tile(cos_full, (B, 1))          # (BS, D)
  sin_bs = jnp.tile(sin_full, (B, 1))          # (BS, D)

  def rot_cols(w):
    # exact signed pair-permutation of columns:
    #   out[:, 2i] = -w[:, 2i+1],  out[:, 2i+1] = w[:, 2i]
    we = w[:, 0::2]
    wo_ = w[:, 1::2]
    return jnp.stack([-wo_, we], axis=-1).reshape(w.shape)

  w_qkvr = jnp.concatenate(
      [params["wq"], params["wk"], params["wv"],
       rot_cols(params["wq"]), rot_cols(params["wk"])], axis=1)   # (D, 5D)

  pad = HIDDEN_PAD - HIDDEN
  w1p = jnp.pad(params["w1"], ((0, 0), (0, pad)))
  w3p = jnp.pad(params["w3"], ((0, 0), (0, pad)))
  w13 = jnp.concatenate([w1p, w3p], axis=1)                       # (D, 2*HP)
  w2p = jnp.pad(params["w2"], ((0, pad), (0, 0)))                 # (HP, D)

  x_flat = x.reshape(BS, D)
  out_flat = pl.pallas_call(
      transformer_block_kernel,
      out_shape=jax.ShapeDtypeStruct((BS, D), jnp.float32),
  )(x_flat, cos_bs, sin_bs,
    params["attn_norm"], params["ffn_norm"],
    w_qkvr, params["wo"], w13, w2p)
  return out_flat.reshape(B, S, D)


# -------------------------- params / freqs setup ------------------------------
def init_params(key):
  ks = jax.random.split(key, 7)
  scale = 0.02
  return {
      "attn_norm": jnp.ones((1, D), jnp.float32),
      "ffn_norm": jnp.ones((1, D), jnp.float32),
      "wq": scale * jax.random.normal(ks[0], (D, D), jnp.float32),
      "wk": scale * jax.random.normal(ks[1], (D, D), jnp.float32),
      "wv": scale * jax.random.normal(ks[2], (D, D), jnp.float32),
      "wo": scale * jax.random.normal(ks[3], (D, D), jnp.float32),
      "w1": scale * jax.random.normal(ks[4], (D, HIDDEN), jnp.float32),
      "w3": scale * jax.random.normal(ks[5], (D, HIDDEN), jnp.float32),
      "w2": scale * jax.random.normal(ks[6], (HIDDEN, D), jnp.float32),
  }


def precompute_freqs(head_dim, seqlen, theta=10000.0):
  freqs = 1.0 / (theta ** (jnp.arange(0, head_dim, 2, dtype=jnp.float32) / head_dim))
  t = jnp.arange(seqlen, dtype=jnp.float32)
  freqs = jnp.outer(t, freqs)                 # (S, head_dim//2)
  return jnp.cos(freqs), jnp.sin(freqs)


# ----------------------- pure-JAX reference (for check) -----------------------
def ref_forward(x, freqs_cos, freqs_sin, params):
  hi = jax.lax.Precision.HIGHEST

  def rmsnorm(v, w):
    return v * jax.lax.rsqrt(jnp.mean(v * v, -1, keepdims=True) + EPS) * w

  xn = rmsnorm(x, params["attn_norm"])
  q = jnp.einsum("bsd,de->bse", xn, params["wq"], precision=hi)
  k = jnp.einsum("bsd,de->bse", xn, params["wk"], precision=hi)
  v = jnp.einsum("bsd,de->bse", xn, params["wv"], precision=hi)
  q = q.reshape(B, S, N_HEADS, HEAD_DIM)
  k = k.reshape(B, S, N_HEADS, HEAD_DIM)
  v = v.reshape(B, S, N_HEADS, HEAD_DIM)

  def rope(t):  # interleaved-pair RoPE, exactly like the PyTorch apply_rotary_emb
    tr = t.reshape(B, S, N_HEADS, HEAD_DIM // 2, 2)
    tre, tim = tr[..., 0], tr[..., 1]
    c = freqs_cos[None, :, None, :]
    s = freqs_sin[None, :, None, :]
    out_r = tre * c - tim * s
    out_i = tre * s + tim * c
    return jnp.stack([out_r, out_i], axis=-1).reshape(B, S, N_HEADS, HEAD_DIM)

  q, k = rope(q), rope(k)
  q = q.transpose(0, 2, 1, 3)
  k = k.transpose(0, 2, 1, 3)
  v = v.transpose(0, 2, 1, 3)
  sc = jnp.einsum("bhqd,bhkd->bhqk", q, k, precision=hi) / math.sqrt(HEAD_DIM)
  mask = jnp.where(jnp.triu(jnp.ones((S, S), bool), 1), -jnp.inf, 0.0).astype(jnp.float32)
  sc = sc + mask[None, None]
  p = jax.nn.softmax(sc, axis=-1)
  o = jnp.einsum("bhqk,bhkd->bhqd", p, v, precision=hi)
  o = o.transpose(0, 2, 1, 3).reshape(B, S, D)
  o = jnp.einsum("bsd,de->bse", o, params["wo"], precision=hi)
  h = x + o

  hn = rmsnorm(h, params["ffn_norm"])
  a = jnp.einsum("bsd,dh->bsh", hn, params["w1"], precision=hi)
  g = jnp.einsum("bsd,dh->bsh", hn, params["w3"], precision=hi)
  silu = a * (1.0 / (1.0 + jnp.exp(-a)))
  ff = jnp.einsum("bsh,hd->bsd", silu * g, params["w2"], precision=hi)
  return h + ff


# --------------------------------- main ---------------------------------------
if __name__ == "__main__":
  key = jax.random.PRNGKey(0)
  k_x, k_p = jax.random.split(key)
  x = jax.random.normal(k_x, (B, S, D), jnp.float32)
  params = init_params(k_p)
  freqs_cos, freqs_sin = precompute_freqs(HEAD_DIM, S)

  out = transformer_block(x, freqs_cos, freqs_sin, params)
  out = jax.block_until_ready(out)

  ref = ref_forward(x, freqs_cos, freqs_sin, params)
  assert out.shape == (B, S, D)
  assert bool(jnp.all(jnp.isfinite(out)))
  max_err = float(jnp.max(jnp.abs(out - ref)))
  assert bool(jnp.allclose(out, ref, atol=1e-3, rtol=1e-3)), f"max_err={max_err}"

  print("KERNEL_OK")
</pallas_src>

<mosaic_0001>
module attributes {stable_mosaic.version = 11 : i64} {
  func.func @transformer_block_kernel(%arg0: memref<16x32xf32, #tpu.memory_space<vmem>>, %arg1: memref<16x32xf32, #tpu.memory_space<vmem>>, %arg2: memref<16x32xf32, #tpu.memory_space<vmem>>, %arg3: memref<1x32xf32, #tpu.memory_space<vmem>>, %arg4: memref<1x32xf32, #tpu.memory_space<vmem>>, %arg5: memref<32x160xf32, #tpu.memory_space<vmem>>, %arg6: memref<32x32xf32, #tpu.memory_space<vmem>>, %arg7: memref<32x256xf32, #tpu.memory_space<vmem>>, %arg8: memref<128x32xf32, #tpu.memory_space<vmem>>, %arg9: memref<16x32xf32, #tpu.memory_space<vmem>>) attributes {dimension_semantics = [], scalar_prefetch = 0 : i64, scratch_operands = 0 : i64, tpu.core_type = #tpu.core_type<tc>} {
    %c0 = arith.constant 0 : index
    %c0_0 = arith.constant 0 : index
    %0 = vector.load %arg0[%c0, %c0_0] : memref<16x32xf32, #tpu.memory_space<vmem>>, vector<16x32xf32>
    %c0_1 = arith.constant 0 : index
    %c0_2 = arith.constant 0 : index
    %1 = vector.load %arg1[%c0_1, %c0_2] : memref<16x32xf32, #tpu.memory_space<vmem>>, vector<16x32xf32>
    %c0_3 = arith.constant 0 : index
    %c0_4 = arith.constant 0 : index
    %2 = vector.load %arg2[%c0_3, %c0_4] : memref<16x32xf32, #tpu.memory_space<vmem>>, vector<16x32xf32>
    %c0_5 = arith.constant 0 : index
    %c0_6 = arith.constant 0 : index
    %3 = vector.load %arg3[%c0_5, %c0_6] : memref<1x32xf32, #tpu.memory_space<vmem>>, vector<1x32xf32>
    %4 = arith.mulf %0, %0 : vector<16x32xf32>
    %cst = arith.constant dense<0.000000e+00> : vector<16xf32>
    %5 = vector.multi_reduction <add>, %4, %cst [1] : vector<16x32xf32> to vector<16xf32>
    %6 = vector.shape_cast %5 : vector<16xf32> to vector<16x1xf32>
    %cst_7 = arith.constant 3.200000e+01 : f32
    %7 = vector.broadcast %cst_7 : f32 to vector<16x1xf32>
    %8 = arith.divf %6, %7 : vector<16x1xf32>
    %cst_8 = arith.constant 9.99999974E-6 : f32
    %9 = vector.broadcast %cst_8 : f32 to vector<16x1xf32>
    %10 = arith.addf %8, %9 : vector<16x1xf32>
    %11 = math.rsqrt %10 : vector<16x1xf32>
    %12 = vector.broadcast %11 : vector<16x1xf32> to vector<16x32xf32>
    %13 = arith.mulf %0, %12 : vector<16x32xf32>
    %14 = vector.broadcast %3 : vector<1x32xf32> to vector<16x32xf32>
    %15 = arith.mulf %13, %14 : vector<16x32xf32>
    %c0_9 = arith.constant 0 : index
    %c0_10 = arith.constant 0 : index
    %16 = vector.load %arg5[%c0_9, %c0_10] : memref<32x160xf32, #tpu.memory_space<vmem>>, vector<32x160xf32>
    %cst_11 = arith.constant dense<0.000000e+00> : vector<16x160xf32>
    %17 = tpu.matmul %15, %16, %cst_11 {dimension_numbers = #tpu.dot_dimension_numbers<[1], [0], [0], [1], [0, 0, 1, 1], [], []>} : vector<16x32xf32>, vector<32x160xf32>, vector<16x160xf32> -> vector<16x160xf32>
    %18 = vector.extract_strided_slice %17 {offsets = [0, 0], sizes = [16, 32], strides = [1, 1]} : vector<16x160xf32> to vector<16x32xf32>
    %19 = vector.extract_strided_slice %17 {offsets = [0, 32], sizes = [16, 32], strides = [1, 1]} : vector<16x160xf32> to vector<16x32xf32>
    %20 = vector.extract_strided_slice %17 {offsets = [0, 64], sizes = [16, 32], strides = [1, 1]} : vector<16x160xf32> to vector<16x32xf32>
    %21 = vector.extract_strided_slice %17 {offsets = [0, 96], sizes = [16, 32], strides = [1, 1]} : vector<16x160xf32> to vector<16x32xf32>
    %22 = vector.extract_strided_slice %17 {offsets = [0, 128], sizes = [16, 32], strides = [1, 1]} : vector<16x160xf32> to vector<16x32xf32>
    %23 = arith.mulf %18, %1 : vector<16x32xf32>
    %24 = arith.mulf %21, %2 : vector<16x32xf32>
    %25 = arith.addf %23, %24 : vector<16x32xf32>
    %26 = arith.mulf %19, %1 : vector<16x32xf32>
    %27 = arith.mulf %22, %2 : vector<16x32xf32>
    %28 = arith.addf %26, %27 : vector<16x32xf32>
    %29 = vector.shape_cast %25 : vector<16x32xf32> to vector<2x8x32xf32>
    %30 = vector.shape_cast %28 : vector<16x32xf32> to vector<2x8x32xf32>
    %31 = vector.shape_cast %20 : vector<16x32xf32> to vector<2x8x32xf32>
    %32 = tpu.iota {dimensions = array<i32: 0>} : vector<8x8xi32>
    %33 = tpu.iota {dimensions = array<i32: 1>} : vector<8x8xi32>
    %34 = arith.cmpi sgt, %33, %32 : vector<8x8xi32>
    %cst_12 = arith.constant -1.000000e+30 : f32
    %cst_13 = arith.constant 0.000000e+00 : f32
    %35 = vector.broadcast %cst_12 : f32 to vector<8x8xf32>
    %36 = vector.broadcast %cst_13 : f32 to vector<8x8xf32>
    %37 = arith.select %34, %35, %36 : vector<8x8xi1>, vector<8x8xf32>
    %c0_14 = arith.constant 0 : index
    %c0_15 = arith.constant 0 : index
    %38 = vector.load %arg6[%c0_14, %c0_15] : memref<32x32xf32, #tpu.memory_space<vmem>>, vector<32x32xf32>
    %cst_16 = arith.constant 0.000000e+00 : f32
    %39 = vector.broadcast %cst_16 : f32 to vector<16x32xf32>
    %40 = vector.extract_strided_slice %29 {offsets = [0, 0, 0], sizes = [2, 8, 8], strides = [1, 1, 1]} : vector<2x8x32xf32> to vector<2x8x8xf32>
    %41 = vector.extract_strided_slice %30 {offsets = [0, 0, 0], sizes = [2, 8, 8], strides = [1, 1, 1]} : vector<2x8x32xf32> to vector<2x8x8xf32>
    %42 = vector.extract_strided_slice %31 {offsets = [0, 0, 0], sizes = [2, 8, 8], strides = [1, 1, 1]} : vector<2x8x32xf32> to vector<2x8x8xf32>
    "tpu.trace_start"() <{level = 10 : i32, message = "bqd,bkd->bqk"}> : () -> ()
    %cst_17 = arith.constant dense<0.000000e+00> : vector<2x8x8xf32>
    %43 = tpu.matmul %40, %41, %cst_17 {dimension_numbers = #tpu.dot_dimension_numbers<[2], [2], [1], [1], [0, 0, 0, 1, 1, 1], [0], [0]>} : vector<2x8x8xf32>, vector<2x8x8xf32>, vector<2x8x8xf32> -> vector<2x8x8xf32>
    "tpu.trace_stop"() : () -> ()
    %cst_18 = arith.constant 0.353553385 : f32
    %44 = vector.broadcast %cst_18 : f32 to vector<2x8x8xf32>
    %45 = arith.mulf %43, %44 : vector<2x8x8xf32>
    %46 = vector.shape_cast %37 : vector<8x8xf32> to vector<1x8x8xf32>
    %47 = vector.broadcast %46 : vector<1x8x8xf32> to vector<2x8x8xf32>
    %48 = arith.addf %45, %47 : vector<2x8x8xf32>
    %cst_19 = arith.constant dense<0xFF800000> : vector<2x8xf32>
    %49 = vector.multi_reduction <maximumf>, %48, %cst_19 [2] : vector<2x8x8xf32> to vector<2x8xf32>
    %50 = vector.shape_cast %49 : vector<2x8xf32> to vector<2x8x1xf32>
    %51 = vector.broadcast %50 : vector<2x8x1xf32> to vector<2x8x8xf32>
    %52 = arith.subf %48, %51 : vector<2x8x8xf32>
    %53 = math.exp %52 : vector<2x8x8xf32>
    %cst_20 = arith.constant dense<0.000000e+00> : vector<2x8xf32>
    %54 = vector.multi_reduction <add>, %53, %cst_20 [2] : vector<2x8x8xf32> to vector<2x8xf32>
    %55 = vector.shape_cast %54 : vector<2x8xf32> to vector<2x8x1xf32>
    %56 = tpu.reciprocal %55 {approx = true} : vector<2x8x1xf32> -> vector<2x8x1xf32>
    %57 = vector.broadcast %56 : vector<2x8x1xf32> to vector<2x8x8xf32>
    %58 = arith.mulf %53, %57 : vector<2x8x8xf32>
    "tpu.trace_start"() <{level = 10 : i32, message = "bqk,bkd->bqd"}> : () -> ()
    %cst_21 = arith.constant dense<0.000000e+00> : vector<2x8x8xf32>
    %59 = tpu.matmul %58, %42, %cst_21 {dimension_numbers = #tpu.dot_dimension_numbers<[2], [1], [1], [2], [0, 0, 0, 1, 1, 2], [0], [0]>} : vector<2x8x8xf32>, vector<2x8x8xf32>, vector<2x8x8xf32> -> vector<2x8x8xf32>
    "tpu.trace_stop"() : () -> ()
    %60 = vector.shape_cast %59 : vector<2x8x8xf32> to vector<16x8xf32>
    %61 = vector.extract_strided_slice %38 {offsets = [0, 0], sizes = [8, 32], strides = [1, 1]} : vector<32x32xf32> to vector<8x32xf32>
    %cst_22 = arith.constant dense<0.000000e+00> : vector<16x32xf32>
    %62 = tpu.matmul %60, %61, %cst_22 {dimension_numbers = #tpu.dot_dimension_numbers<[1], [0], [0], [1], [0, 0, 1, 1], [], []>} : vector<16x8xf32>, vector<8x32xf32>, vector<16x32xf32> -> vector<16x32xf32>
    %63 = arith.addf %39, %62 : vector<16x32xf32>
    %64 = vector.extract_strided_slice %29 {offsets = [0, 0, 8], sizes = [2, 8, 8], strides = [1, 1, 1]} : vector<2x8x32xf32> to vector<2x8x8xf32>
    %65 = vector.extract_strided_slice %30 {offsets = [0, 0, 8], sizes = [2, 8, 8], strides = [1, 1, 1]} : vector<2x8x32xf32> to vector<2x8x8xf32>
    %66 = vector.extract_strided_slice %31 {offsets = [0, 0, 8], sizes = [2, 8, 8], strides = [1, 1, 1]} : vector<2x8x32xf32> to vector<2x8x8xf32>
    "tpu.trace_start"() <{level = 10 : i32, message = "bqd,bkd->bqk"}> : () -> ()
    %cst_23 = arith.constant dense<0.000000e+00> : vector<2x8x8xf32>
    %67 = tpu.matmul %64, %65, %cst_23 {dimension_numbers = #tpu.dot_dimension_numbers<[2], [2], [1], [1], [0, 0, 0, 1, 1, 1], [0], [0]>} : vector<2x8x8xf32>, vector<2x8x8xf32>, vector<2x8x8xf32> -> vector<2x8x8xf32>
    "tpu.trace_stop"() : () -> ()
    %cst_24 = arith.constant 0.353553385 : f32
    %68 = vector.broadcast %cst_24 : f32 to vector<2x8x8xf32>
    %69 = arith.mulf %67, %68 : vector<2x8x8xf32>
    %70 = vector.shape_cast %37 : vector<8x8xf32> to vector<1x8x8xf32>
    %71 = vector.broadcast %70 : vector<1x8x8xf32> to vector<2x8x8xf32>
    %72 = arith.addf %69, %71 : vector<2x8x8xf32>
    %cst_25 = arith.constant dense<0xFF800000> : vector<2x8xf32>
    %73 = vector.multi_reduction <maximumf>, %72, %cst_25 [2] : vector<2x8x8xf32> to vector<2x8xf32>
    %74 = vector.shape_cast %73 : vector<2x8xf32> to vector<2x8x1xf32>
    %75 = vector.broadcast %74 : vector<2x8x1xf32> to vector<2x8x8xf32>
    %76 = arith.subf %72, %75 : vector<2x8x8xf32>
    %77 = math.exp %76 : vector<2x8x8xf32>
    %cst_26 = arith.constant dense<0.000000e+00> : vector<2x8xf32>
    %78 = vector.multi_reduction <add>, %77, %cst_26 [2] : vector<2x8x8xf32> to vector<2x8xf32>
    %79 = vector.shape_cast %78 : vector<2x8xf32> to vector<2x8x1xf32>
    %80 = tpu.reciprocal %79 {approx = true} : vector<2x8x1xf32> -> vector<2x8x1xf32>
    %81 = vector.broadcast %80 : vector<2x8x1xf32> to vector<2x8x8xf32>
    %82 = arith.mulf %77, %81 : vector<2x8x8xf32>
    "tpu.trace_start"() <{level = 10 : i32, message = "bqk,bkd->bqd"}> : () -> ()
    %cst_27 = arith.constant dense<0.000000e+00> : vector<2x8x8xf32>
    %83 = tpu.matmul %82, %66, %cst_27 {dimension_numbers = #tpu.dot_dimension_numbers<[2], [1], [1], [2], [0, 0, 0, 1, 1, 2], [0], [0]>} : vector<2x8x8xf32>, vector<2x8x8xf32>, vector<2x8x8xf32> -> vector<2x8x8xf32>
    "tpu.trace_stop"() : () -> ()
    %84 = vector.shape_cast %83 : vector<2x8x8xf32> to vector<16x8xf32>
    %85 = vector.extract_strided_slice %38 {offsets = [8, 0], sizes = [8, 32], strides = [1, 1]} : vector<32x32xf32> to vector<8x32xf32>
    %cst_28 = arith.constant dense<0.000000e+00> : vector<16x32xf32>
    %86 = tpu.matmul %84, %85, %cst_28 {dimension_numbers = #tpu.dot_dimension_numbers<[1], [0], [0], [1], [0, 0, 1, 1], [], []>} : vector<16x8xf32>, vector<8x32xf32>, vector<16x32xf32> -> vector<16x32xf32>
    %87 = arith.addf %63, %86 : vector<16x32xf32>
    %88 = vector.extract_strided_slice %29 {offsets = [0, 0, 16], sizes = [2, 8, 8], strides = [1, 1, 1]} : vector<2x8x32xf32> to vector<2x8x8xf32>
    %89 = vector.extract_strided_slice %30 {offsets = [0, 0, 16], sizes = [2, 8, 8], strides = [1, 1, 1]} : vector<2x8x32xf32> to vector<2x8x8xf32>
    %90 = vector.extract_strided_slice %31 {offsets = [0, 0, 16], sizes = [2, 8, 8], strides = [1, 1, 1]} : vector<2x8x32xf32> to vector<2x8x8xf32>
    "tpu.trace_start"() <{level = 10 : i32, message = "bqd,bkd->bqk"}> : () -> ()
    %cst_29 = arith.constant dense<0.000000e+00> : vector<2x8x8xf32>
    %91 = tpu.matmul %88, %89, %cst_29 {dimension_numbers = #tpu.dot_dimension_numbers<[2], [2], [1], [1], [0, 0, 0, 1, 1, 1], [0], [0]>} : vector<2x8x8xf32>, vector<2x8x8xf32>, vector<2x8x8xf32> -> vector<2x8x8xf32>
    "tpu.trace_stop"() : () -> ()
    %cst_30 = arith.constant 0.353553385 : f32
    %92 = vector.broadcast %cst_30 : f32 to vector<2x8x8xf32>
    %93 = arith.mulf %91, %92 : vector<2x8x8xf32>
    %94 = vector.shape_cast %37 : vector<8x8xf32> to vector<1x8x8xf32>
    %95 = vector.broadcast %94 : vector<1x8x8xf32> to vector<2x8x8xf32>
    %96 = arith.addf %93, %95 : vector<2x8x8xf32>
    %cst_31 = arith.constant dense<0xFF800000> : vector<2x8xf32>
    %97 = vector.multi_reduction <maximumf>, %96, %cst_31 [2] : vector<2x8x8xf32> to vector<2x8xf32>
    %98 = vector.shape_cast %97 : vector<2x8xf32> to vector<2x8x1xf32>
    %99 = vector.broadcast %98 : vector<2x8x1xf32> to vector<2x8x8xf32>
    %100 = arith.subf %96, %99 : vector<2x8x8xf32>
    %101 = math.exp %100 : vector<2x8x8xf32>
    %cst_32 = arith.constant dense<0.000000e+00> : vector<2x8xf32>
    %102 = vector.multi_reduction <add>, %101, %cst_32 [2] : vector<2x8x8xf32> to vector<2x8xf32>
    %103 = vector.shape_cast %102 : vector<2x8xf32> to vector<2x8x1xf32>
    %104 = tpu.reciprocal %103 {approx = true} : vector<2x8x1xf32> -> vector<2x8x1xf32>
    %105 = vector.broadcast %104 : vector<2x8x1xf32> to vector<2x8x8xf32>
    %106 = arith.mulf %101, %105 : vector<2x8x8xf32>
    "tpu.trace_start"() <{level = 10 : i32, message = "bqk,bkd->bqd"}> : () -> ()
    %cst_33 = arith.constant dense<0.000000e+00> : vector<2x8x8xf32>
    %107 = tpu.matmul %106, %90, %cst_33 {dimension_numbers = #tpu.dot_dimension_numbers<[2], [1], [1], [2], [0, 0, 0, 1, 1, 2], [0], [0]>} : vector<2x8x8xf32>, vector<2x8x8xf32>, vector<2x8x8xf32> -> vector<2x8x8xf32>
    "tpu.trace_stop"() : () -> ()
    %108 = vector.shape_cast %107 : vector<2x8x8xf32> to vector<16x8xf32>
    %109 = vector.extract_strided_slice %38 {offsets = [16, 0], sizes = [8, 32], strides = [1, 1]} : vector<32x32xf32> to vector<8x32xf32>
    %cst_34 = arith.constant dense<0.000000e+00> : vector<16x32xf32>
    %110 = tpu.matmul %108, %109, %cst_34 {dimension_numbers = #tpu.dot_dimension_numbers<[1], [0], [0], [1], [0, 0, 1, 1], [], []>} : vector<16x8xf32>, vector<8x32xf32>, vector<16x32xf32> -> vector<16x32xf32>
    %111 = arith.addf %87, %110 : vector<16x32xf32>
    %112 = vector.extract_strided_slice %29 {offsets = [0, 0, 24], sizes = [2, 8, 8], strides = [1, 1, 1]} : vector<2x8x32xf32> to vector<2x8x8xf32>
    %113 = vector.extract_strided_slice %30 {offsets = [0, 0, 24], sizes = [2, 8, 8], strides = [1, 1, 1]} : vector<2x8x32xf32> to vector<2x8x8xf32>
    %114 = vector.extract_strided_slice %31 {offsets = [0, 0, 24], sizes = [2, 8, 8], strides = [1, 1, 1]} : vector<2x8x32xf32> to vector<2x8x8xf32>
    "tpu.trace_start"() <{level = 10 : i32, message = "bqd,bkd->bqk"}> : () -> ()
    %cst_35 = arith.constant dense<0.000000e+00> : vector<2x8x8xf32>
    %115 = tpu.matmul %112, %113, %cst_35 {dimension_numbers = #tpu.dot_dimension_numbers<[2], [2], [1], [1], [0, 0, 0, 1, 1, 1], [0], [0]>} : vector<2x8x8xf32>, vector<2x8x8xf32>, vector<2x8x8xf32> -> vector<2x8x8xf32>
    "tpu.trace_stop"() : () -> ()
    %cst_36 = arith.constant 0.353553385 : f32
    %116 = vector.broadcast %cst_36 : f32 to vector<2x8x8xf32>
    %117 = arith.mulf %115, %116 : vector<2x8x8xf32>
    %118 = vector.shape_cast %37 : vector<8x8xf32> to vector<1x8x8xf32>
    %119 = vector.broadcast %118 : vector<1x8x8xf32> to vector<2x8x8xf32>
    %120 = arith.addf %117, %119 : vector<2x8x8xf32>
    %cst_37 = arith.constant dense<0xFF800000> : vector<2x8xf32>
    %121 = vector.multi_reduction <maximumf>, %120, %cst_37 [2] : vector<2x8x8xf32> to vector<2x8xf32>
    %122 = vector.shape_cast %121 : vector<2x8xf32> to vector<2x8x1xf32>
    %123 = vector.broadcast %122 : vector<2x8x1xf32> to vector<2x8x8xf32>
    %124 = arith.subf %120, %123 : vector<2x8x8xf32>
    %125 = math.exp %124 : vector<2x8x8xf32>
    %cst_38 = arith.constant dense<0.000000e+00> : vector<2x8xf32>
    %126 = vector.multi_reduction <add>, %125, %cst_38 [2] : vector<2x8x8xf32> to vector<2x8xf32>
    %127 = vector.shape_cast %126 : vector<2x8xf32> to vector<2x8x1xf32>
    %128 = tpu.reciprocal %127 {approx = true} : vector<2x8x1xf32> -> vector<2x8x1xf32>
    %129 = vector.broadcast %128 : vector<2x8x1xf32> to vector<2x8x8xf32>
    %130 = arith.mulf %125, %129 : vector<2x8x8xf32>
    "tpu.trace_start"() <{level = 10 : i32, message = "bqk,bkd->bqd"}> : () -> ()
    %cst_39 = arith.constant dense<0.000000e+00> : vector<2x8x8xf32>
    %131 = tpu.matmul %130, %114, %cst_39 {dimension_numbers = #tpu.dot_dimension_numbers<[2], [1], [1], [2], [0, 0, 0, 1, 1, 2], [0], [0]>} : vector<2x8x8xf32>, vector<2x8x8xf32>, vector<2x8x8xf32> -> vector<2x8x8xf32>
    "tpu.trace_stop"() : () -> ()
    %132 = vector.shape_cast %131 : vector<2x8x8xf32> to vector<16x8xf32>
    %133 = vector.extract_strided_slice %38 {offsets = [24, 0], sizes = [8, 32], strides = [1, 1]} : vector<32x32xf32> to vector<8x32xf32>
    %cst_40 = arith.constant dense<0.000000e+00> : vector<16x32xf32>
    %134 = tpu.matmul %132, %133, %cst_40 {dimension_numbers = #tpu.dot_dimension_numbers<[1], [0], [0], [1], [0, 0, 1, 1], [], []>} : vector<16x8xf32>, vector<8x32xf32>, vector<16x32xf32> -> vector<16x32xf32>
    %135 = arith.addf %111, %134 : vector<16x32xf32>
    %136 = arith.addf %0, %135 : vector<16x32xf32>
    %c0_41 = arith.constant 0 : index
    %c0_42 = arith.constant 0 : index
    %137 = vector.load %arg4[%c0_41, %c0_42] : memref<1x32xf32, #tpu.memory_space<vmem>>, vector<1x32xf32>
    %138 = arith.mulf %136, %136 : vector<16x32xf32>
    %cst_43 = arith.constant dense<0.000000e+00> : vector<16xf32>
    %139 = vector.multi_reduction <add>, %138, %cst_43 [1] : vector<16x32xf32> to vector<16xf32>
    %140 = vector.shape_cast %139 : vector<16xf32> to vector<16x1xf32>
    %cst_44 = arith.constant 3.200000e+01 : f32
    %141 = vector.broadcast %cst_44 : f32 to vector<16x1xf32>
    %142 = arith.divf %140, %141 : vector<16x1xf32>
    %cst_45 = arith.constant 9.99999974E-6 : f32
    %143 = vector.broadcast %cst_45 : f32 to vector<16x1xf32>
    %144 = arith.addf %142, %143 : vector<16x1xf32>
    %145 = math.rsqrt %144 : vector<16x1xf32>
    %146 = vector.broadcast %145 : vector<16x1xf32> to vector<16x32xf32>
    %147 = arith.mulf %136, %146 : vector<16x32xf32>
    %148 = vector.broadcast %137 : vector<1x32xf32> to vector<16x32xf32>
    %149 = arith.mulf %147, %148 : vector<16x32xf32>
    %c0_46 = arith.constant 0 : index
    %c0_47 = arith.constant 0 : index
    %150 = vector.load %arg7[%c0_46, %c0_47] : memref<32x256xf32, #tpu.memory_space<vmem>>, vector<32x256xf32>
    %cst_48 = arith.constant dense<0.000000e+00> : vector<16x256xf32>
    %151 = tpu.matmul %149, %150, %cst_48 {dimension_numbers = #tpu.dot_dimension_numbers<[1], [0], [0], [1], [0, 0, 1, 1], [], []>} : vector<16x32xf32>, vector<32x256xf32>, vector<16x256xf32> -> vector<16x256xf32>
    %152 = vector.extract_strided_slice %151 {offsets = [0, 0], sizes = [16, 128], strides = [1, 1]} : vector<16x256xf32> to vector<16x128xf32>
    %153 = vector.extract_strided_slice %151 {offsets = [0, 128], sizes = [16, 128], strides = [1, 1]} : vector<16x256xf32> to vector<16x128xf32>
    %cst_49 = arith.constant 0.000000e+00 : f32
    %154 = vector.broadcast %cst_49 : f32 to vector<16x128xf32>
    %155 = arith.subf %154, %152 : vector<16x128xf32>
    %156 = math.exp %155 : vector<16x128xf32>
    %cst_50 = arith.constant 1.000000e+00 : f32
    %157 = vector.broadcast %cst_50 : f32 to vector<16x128xf32>
    %158 = arith.addf %157, %156 : vector<16x128xf32>
    %159 = tpu.reciprocal %158 {approx = true} : vector<16x128xf32> -> vector<16x128xf32>
    %160 = arith.mulf %152, %159 : vector<16x128xf32>
    %161 = arith.mulf %160, %153 : vector<16x128xf32>
    %c0_51 = arith.constant 0 : index
    %c0_52 = arith.constant 0 : index
    %162 = vector.load %arg8[%c0_51, %c0_52] : memref<128x32xf32, #tpu.memory_space<vmem>>, vector<128x32xf32>
    %cst_53 = arith.constant dense<0.000000e+00> : vector<16x32xf32>
    %163 = tpu.matmul %161, %162, %cst_53 {dimension_numbers = #tpu.dot_dimension_numbers<[1], [0], [0], [1], [0, 0, 1, 1], [], []>} : vector<16x128xf32>, vector<128x32xf32>, vector<16x32xf32> -> vector<16x32xf32>
    %164 = arith.addf %136, %163 : vector<16x32xf32>
    %c0_54 = arith.constant 0 : index
    %c0_55 = arith.constant 0 : index
    %165 = vector.load %arg9[%c0_54, %c0_55] : memref<16x32xf32, #tpu.memory_space<vmem>>, vector<16x32xf32>
    tpu.vector_store %arg9[%c0_54, %c0_55], %164 {strides = array<i32>} : memref<16x32xf32, #tpu.memory_space<vmem>>, vector<16x32xf32>,
    return
  }
}

</mosaic_0001>

<llo_original>
// kernel: tpu_custom_call.1
$region0: #{tpu_custom_call.1}
  #allocation0 [shape = 'u32[]', space=smem, size = 0x4, offset = 0x4, fixed_abs, tag = 'smem constant byte address 0x4 - core index']
  #allocation1 [shape = 'u32[72,128]{1,0:T(1,128)}', space=vmem, size = 0x9000, scoped, tag = 'internal scratch']
  %s0 = inlined_call_operand.hbm [shape: f32[16,32], index: 0, kind: input, shape index: {}]
  %s1 = inlined_call_operand.hbm [shape: f32[16,32], index: 1, kind: input, shape index: {}]
  %s2 = inlined_call_operand.hbm [shape: f32[16,32], index: 2, kind: input, shape index: {}]
  %s3 = inlined_call_operand.vmem [shape: f32[1,32], index: 3, kind: input, shape index: {}]
  %s4 = inlined_call_operand.vmem [shape: f32[1,32], index: 4, kind: input, shape index: {}]
  %s5 = inlined_call_operand.vmem [shape: f32[32,160], index: 5, kind: input, shape index: {}]
  %s6 = inlined_call_operand.vmem [shape: f32[32,32], index: 6, kind: input, shape index: {}]
  %s7 = inlined_call_operand.vmem [shape: f32[32,256], index: 7, kind: input, shape index: {}]
  %s8 = inlined_call_operand.vmem [shape: f32[128,32], index: 8, kind: input, shape index: {}]
  %s9 = inlined_call_operand.hbm [shape: f32[16,32], index: 9, kind: output, shape index: {}]
  %s10 = sld [smem:[#allocation0]]
  $region58: #{tpu_custom_call.1} parent=0
    _
  %s12 = ssub.s32 1, %s10
  %s13 = scalar_select 0, %s12, %s10
  $region1: #{tpu_custom_call.1} parent=0
    #allocation2 [shape = 'u8[8192]{0}', space=vmem, size = 0x2000, scoped, tag = 'input window, operand 0, single buffered']
    #allocation3 [shape = 's32[1]{0}', space=sflag, size = 0x4, scoped, tag = 'scoped memory for tpu_custom_call.1']
    #allocation4 [shape = 's32[1]{0}', space=sflag, size = 0x4, scoped, tag = 'scoped memory for tpu_custom_call.1']
    #allocation5 [shape = 'u8[8192]{0}', space=vmem, size = 0x2000, scoped, tag = 'input window, operand 1, single buffered']
    #allocation6 [shape = 's32[1]{0}', space=sflag, size = 0x4, scoped, tag = 'scoped memory for tpu_custom_call.1']
    #allocation7 [shape = 'u8[8192]{0}', space=vmem, size = 0x2000, scoped, tag = 'input window, operand 2, single buffered']
    #allocation8 [shape = 'u8[8192]{0}', space=vmem, size = 0x2000, scoped, tag = 'output window, operand 0, single buffered']
    %14 = vsyncpa [#allocation3], 0
    %15 = vsyncpa [#allocation6], 0
    %16 = vsyncpa [#allocation4], 0
    // Predicated region
    $region2: #{tpu_custom_call.1} parent=1 // pred_check
      _
    $region3: #{tpu_custom_call.1} parent=1 // pred_check_branch
      %18 = sbr.rel (0) target = $region5
    $region4: #{tpu_custom_call.1} parent=1 // pred_region
      %20 = vsyncadd [#allocation3], 0
      %s21 = sshll.u32 %s0, 4
      %s22 = int_to_ptr.hbm [resolvable:$true] %s21
      %s23 = sshll.u32 [#allocation2], 4
      %s24 = int_to_ptr.vmem [resolvable:$true] %s23
      %29 = dma.hbm_to_vmem [thread:$0]  %s22, 256, %s24, [#allocation3], 128, 128, 8
    $region5: #{tpu_custom_call.1} parent=1 // pred_fallthru
      _
    // Predicated region
    $region6: #{tpu_custom_call.1} parent=1 // pred_check
      _
    $region7: #{tpu_custom_call.1} parent=1 // pred_check_branch
      %31 = sbr.rel (0) target = $region9
    $region8: #{tpu_custom_call.1} parent=1 // pred_region
      %33 = vsyncadd [#allocation6], 0
      %s34 = sshll.u32 %s1, 4
      %s35 = int_to_ptr.hbm [resolvable:$true] %s34
      %s36 = sshll.u32 [#allocation5], 4
      %s37 = int_to_ptr.vmem [resolvable:$true] %s36
      %42 = dma.hbm_to_vmem [thread:$0]  %s35, 256, %s37, [#allocation6], 128, 128, 8
    $region9: #{tpu_custom_call.1} parent=1 // pred_fallthru
      _
    // Predicated region
    $region10: #{tpu_custom_call.1} parent=1 // pred_check
      _
    $region11: #{tpu_custom_call.1} parent=1 // pred_check_branch
      %44 = sbr.rel (0) target = $region13
    $region12: #{tpu_custom_call.1} parent=1 // pred_region
      %46 = vsyncadd [#allocation6], 0
      %s47 = sshll.u32 %s2, 4
      %s48 = int_to_ptr.hbm [resolvable:$true] %s47
      %s49 = sshll.u32 [#allocation7], 4
      %s50 = int_to_ptr.vmem [resolvable:$true] %s49
      %55 = dma.hbm_to_vmem [thread:$0]  %s48, 256, %s50, [#allocation6], 128, 128, 8
    $region13: #{tpu_custom_call.1} parent=1 // pred_fallthru
      _
    // Predicated region
    $region14: #{tpu_custom_call.1} parent=1 // pred_check
      _
    $region15: #{tpu_custom_call.1} parent=1 // pred_check_branch
      %57 = sbr.rel (0) target = $region17
    $region16: #{tpu_custom_call.1} parent=1 // pred_region
      _
    $region17: #{tpu_custom_call.1} parent=1 // pred_fallthru
      _
    // Predicated region
    $region18: #{tpu_custom_call.1} parent=1 // pred_check
      _
    $region19: #{tpu_custom_call.1} parent=1 // pred_check_branch
      %59 = sbr.rel (0) target = $region21
    $region20: #{tpu_custom_call.1} parent=1 // pred_region
      _
    $region21: #{tpu_custom_call.1} parent=1 // pred_fallthru
      _
    // Predicated region
    $region22: #{tpu_custom_call.1} parent=1 // pred_check
      _
    $region23: #{tpu_custom_call.1} parent=1 // pred_check_branch
      %61 = sbr.rel (0) target = $region25
    $region24: #{tpu_custom_call.1} parent=1 // pred_region
      _
    $region25: #{tpu_custom_call.1} parent=1 // pred_fallthru
      _
    // Predicated region
    $region26: #{tpu_custom_call.1} parent=1 // pred_check
      _
    $region27: #{tpu_custom_call.1} parent=1 // pred_check_branch
      %63 = sbr.rel (0) target = $region29
    $region28: #{tpu_custom_call.1} parent=1 // pred_region
      _
    $region29: #{tpu_custom_call.1} parent=1 // pred_fallthru
      _
    // Predicated region
    $region30: #{tpu_custom_call.1} parent=1 // pred_check
      _
    $region31: #{tpu_custom_call.1} parent=1 // pred_check_branch
      %65 = sbr.rel (0) target = $region33
    $region32: #{tpu_custom_call.1} parent=1 // pred_region
      _
    $region33: #{tpu_custom_call.1} parent=1 // pred_fallthru
      _
    // Predicated region
    $region34: #{tpu_custom_call.1} parent=1 // pred_check
      _
    $region35: #{tpu_custom_call.1} parent=1 // pred_check_branch
      %67 = sbr.rel (0) target = $region37
    $region36: #{tpu_custom_call.1} parent=1 // pred_region
      _
    $region37: #{tpu_custom_call.1} parent=1 // pred_fallthru
      _
    // Predicated region
    $region38: #{tpu_custom_call.1} parent=1 // pred_check
      _
    $region39: #{tpu_custom_call.1} parent=1 // pred_check_branch
      %69 = sbr.rel (0) target = $region41
    $region40: #{tpu_custom_call.1} parent=1 // pred_region
      %71 = dma.done [#allocation3], 256
    $region41: #{tpu_custom_call.1} parent=1 // pred_fallthru
      _
    // Predicated region
    $region42: #{tpu_custom_call.1} parent=1 // pred_check
      _
    $region43: #{tpu_custom_call.1} parent=1 // pred_check_branch
      %73 = sbr.rel (0) target = $region45
    $region44: #{tpu_custom_call.1} parent=1 // pred_region
      %75 = dma.done [#allocation6], 256
    $region45: #{tpu_custom_call.1} parent=1 // pred_fallthru
      _
    // Predicated region
    $region46: #{tpu_custom_call.1} parent=1 // pred_check
      _
    $region47: #{tpu_custom_call.1} parent=1 // pred_check_branch
      %77 = sbr.rel (0) target = $region49
    $region48: #{tpu_custom_call.1} parent=1 // pred_region
      %79 = dma.done [#allocation6], 256
    $region49: #{tpu_custom_call.1} parent=1 // pred_fallthru
      _
    %v80 = vld [vmem:[#allocation2] sm:$0xff]
    %v81 = vld [vmem:[#allocation2 + $0x8] sm:$0xff]
    %v82 = vld [vmem:[#allocation5] sm:$0xff]
    %v83 = vld [vmem:[#allocation5 + $0x8] sm:$0xff]
    %v84 = vld [vmem:[#allocation7] sm:$0xff]
    %v85 = vld [vmem:[#allocation7 + $0x8] sm:$0xff]
    %v86 = vld [vmem:[%s3] sm:$0x1]
    %v87 = vmul.f32 %v80, %v80
    %v88 = vmul.f32 %v81, %v81
    %vm89 = vcmask 261120
    %v90 = vsel %vm89, %v87, 0.0
    %91 = vadd.xlane.f32.xlu0 %v90
    %v92 = vpop.xlane.xlu0 %91
    %v93 = vsel %vm89, %v88, 0.0
    %94 = vadd.xlane.f32.xlu0 %v93
    %v95 = vpop.xlane.xlu0 %94
    %v96 = vrcp.pop 32.0
    %v97 = vmul.f32 32.0, %v96
    %v98 = vsub.f32 1.0, %v97
    %v99 = vmul.f32 %v96, %v98
    %v100 = vadd.f32 %v96, %v99
    %vm101 = vweird.f32 %v96
    %v102 = vsel %vm101, %v96, %v100
    %v103 = vmul.f32 %v92, %v102
    %v104 = vmul.f32 %v95, %v102
    %v105 = vadd.f32 %v103, 1e-05
    %v106 = vadd.f32 %v104, 1e-05
    %v107 = vrsqrt.pop %v105
    %v108 = vmul.f32 %v107, %v105
    %v109 = vmul.f32 %v108, %v107
    %v110 = vmul.f32 0.5, %v109
    %v111 = vsub.f32 1.5, %v110
    %v112 = vmul.f32 %v107, %v111
    %vm113 = vweird.f32 %v105
    %vm114 = vweird.f32 %v107
    %vm115 = vmor %vm113, %vm114
    %v116 = vsel %vm115, %v107, %v112
    %v117 = vrsqrt.pop %v106
    %v118 = vmul.f32 %v117, %v106
    %v119 = vmul.f32 %v118, %v117
    %v120 = vmul.f32 0.5, %v119
    %v121 = vsub.f32 1.5, %v120
    %v122 = vmul.f32 %v117, %v121
    %vm123 = vweird.f32 %v106
    %vm124 = vweird.f32 %v117
    %vm125 = vmor %vm123, %vm124
    %v126 = vsel %vm125, %v117, %v122
    %v127 = vmul.f32 %v80, %v116
    %v128 = vmul.f32 %v81, %v126
    %v130 = vperm.slane %v86, 0
    %v132 = vmul.f32 %v127, %v130
    %v133 = vmul.f32 %v128, %v130
    %v134 = vld [vmem:[%s5] sm:$0xff]
    %v135 = vld [vmem:[%s5 + $0x8] sm:$0xff]
    %v136 = vld [vmem:[%s5 + $0x10] sm:$0xff]
    %v137 = vld [vmem:[%s5 + $0x18] sm:$0xff]
    %v138 = vld [vmem:[%s5 + $0x20] sm:$0xff]
    %v139 = vld [vmem:[%s5 + $0x28] sm:$0xff]
    %v140 = vld [vmem:[%s5 + $0x30] sm:$0xff]
    %v141 = vld [vmem:[%s5 + $0x38] sm:$0xff]
    %v143 = vsel %vm89, %v132, 0
    %v146 = vsel %vm89, %v133, 0
    %148 = vmatpush.msra.mxu0 0.0
    %149 = vmatpush.msra.mxu0 0.0
    %150 = vmatpush.msra.mxu0 0.0
    %151 = vmatpush.msra.mxu0 0.0
    %152 = vmatpush.msra.mxu0 0.0
    %153 = vmatpush.msra.mxu0 0.0
    %154 = vmatpush.msra.mxu0 0.0
    %155 = vmatpush.msra.mxu0 0.0
    %156 = vmatpush.msra.mxu0 0.0
    %157 = vmatpush.msra.mxu0 0.0
    %158 = vmatpush.msra.mxu0 0.0
    %159 = vmatpush.msra.mxu0 0.0
    %160 = vmatpush.msra.mxu0 %v140
    %161 = vmatpush.msra.mxu0 %v138
    %162 = vmatpush.msra.mxu0 %v136
    %163 = vmatpush.msra.mxu0 %v134
    %164 = vmatmul.f32.gmra.mxu0 %v143
    %v165 = vpop.f32.mrf.mxu0
    %v166 = vadd.f32 0.0, %v165
    %167 = vmatmul.f32.gmra.mxu0 %v146
    %v168 = vpop.f32.mrf.mxu0
    %v169 = vadd.f32 0.0, %v168
    %170 = vdwg.mxu0
    %171 = vmatpush.msra.mxu0 0.0
    %172 = vmatpush.msra.mxu0 0.0
    %173 = vmatpush.msra.mxu0 0.0
    %174 = vmatpush.msra.mxu0 0.0
    %175 = vmatpush.msra.mxu0 0.0
    %176 = vmatpush.msra.mxu0 0.0
    %177 = vmatpush.msra.mxu0 0.0
    %178 = vmatpush.msra.mxu0 0.0
    %179 = vmatpush.msra.mxu0 0.0
    %180 = vmatpush.msra.mxu0 0.0
    %181 = vmatpush.msra.mxu0 0.0
    %182 = vmatpush.msra.mxu0 0.0
    %183 = vmatpush.msra.mxu0 %v141
    %184 = vmatpush.msra.mxu0 %v139
    %185 = vmatpush.msra.mxu0 %v137
    %186 = vmatpush.msra.mxu0 %v135
    %187 = vmatmul.f32.gmra.mxu0 %v143
    %v188 = vpop.f32.mrf.mxu0
    %v189 = vadd.f32 0.0, %v188
    %190 = vmatmul.f32.gmra.mxu0 %v146
    %v191 = vpop.f32.mrf.mxu0
    %v192 = vadd.f32 0.0, %v191
    %193 = vdwg.mxu0
    %v194 = vmul.f32 %v166, %v82
    %v195 = vmul.f32 %v169, %v83
    %198 = vrot.lane.b32.xlu0 %v84, 96
    %v199 = vpop.permute.xlu0 %198
    %200 = vrot.lane.b32.xlu0 %v85, 96
    %v201 = vpop.permute.xlu0 %200
    %v204 = vmul.f32 %v166, %v199
    %v205 = vmul.f32 %v169, %v201
    %208 = vrot.lane.b32.xlu0 %v204, 32
    %v209 = vpop.permute.xlu0 %208
    %210 = vrot.lane.b32.xlu0 %v205, 32
    %v211 = vpop.permute.xlu0 %210
    %v214 = vadd.f32 %v194, %v209
    %v215 = vadd.f32 %v195, %v211
    %218 = vrot.lane.b32.xlu0 %v82, 32
    %v219 = vpop.permute.xlu0 %218
    %220 = vrot.lane.b32.xlu0 %v83, 32
    %v221 = vpop.permute.xlu0 %220
    %v224 = vmul.f32 %v166, %v219
    %v225 = vmul.f32 %v169, %v221
    %v226 = vmul.f32 %v189, %v84
    %v227 = vmul.f32 %v192, %v85
    %230 = vrot.lane.b32.xlu0 %v226, 32
    %v231 = vpop.permute.xlu0 %230
    %232 = vrot.lane.b32.xlu0 %v227, 32
    %v233 = vpop.permute.xlu0 %232
    %v236 = vadd.f32 %v224, %v231
    %v237 = vadd.f32 %v225, %v233
    %v238 = vlaneseq
    %v239 = vshrl.u32 %v238, 7
    %v240 = vlaneseq
    %v241 = vand.u32 %v240, 127
    %vm242 = vcmp.gt.s32.totalorder %v241, %v239
    %v243 = vsel %vm242, -1e+30, 0.0
    %v244 = vld [vmem:[%s6] sm:$0xff]
    %v245 = vld [vmem:[%s6 + $0x8] sm:$0xff]
    %v246 = vld [vmem:[%s6 + $0x10] sm:$0xff]
    %v247 = vld [vmem:[%s6 + $0x18] sm:$0xff]
    %249 = vrot.lane.b32.xlu0 %v236, 96
    %v250 = vpop.permute.xlu0 %249
    %vm251 = vcmask 64512
    %v253 = vsel %vm251, %v214, 0
    %v255 = vsel %vm251, %v250, 0
    %257 = vmatpush.xpose.msra.mxu0 0.0
    %258 = vmatpush.xpose.msra.mxu0 0.0
    %259 = vmatpush.xpose.msra.mxu0 0.0
    %260 = vmatpush.xpose.msra.mxu0 0.0
    %261 = vmatpush.xpose.msra.mxu0 0.0
    %262 = vmatpush.xpose.msra.mxu0 0.0
    %263 = vmatpush.xpose.msra.mxu0 0.0
    %264 = vmatpush.xpose.msra.mxu0 0.0
    %265 = vmatpush.xpose.msra.mxu0 0.0
    %266 = vmatpush.xpose.msra.mxu0 0.0
    %267 = vmatpush.xpose.msra.mxu0 0.0
    %268 = vmatpush.xpose.msra.mxu0 0.0
    %269 = vmatpush.xpose.msra.mxu0 0.0
    %270 = vmatpush.xpose.msra.mxu0 0.0
    %271 = vmatpush.xpose.msra.mxu0 0.0
    %272 = vmatpush.xpose.msra.mxu0 %v255
    %273 = vmatmul.f32.gmra.mxu0 %v253
    %v274 = vpop.f32.mrf.mxu0
    %v275 = vadd.f32 0.0, %v274
    %276 = vdwg.mxu0
    %278 = vrot.lane.b32.xlu0 %v237, 96
    %v279 = vpop.permute.xlu0 %278
    %v281 = vsel %vm251, %v215, 0
    %v283 = vsel %vm251, %v279, 0
    %285 = vmatpush.xpose.msra.mxu0 0.0
    %286 = vmatpush.xpose.msra.mxu0 0.0
    %287 = vmatpush.xpose.msra.mxu0 0.0
    %288 = vmatpush.xpose.msra.mxu0 0.0
    %289 = vmatpush.xpose.msra.mxu0 0.0
    %290 = vmatpush.xpose.msra.mxu0 0.0
    %291 = vmatpush.xpose.msra.mxu0 0.0
    %292 = vmatpush.xpose.msra.mxu0 0.0
    %293 = vmatpush.xpose.msra.mxu0 0.0
    %294 = vmatpush.xpose.msra.mxu0 0.0
    %295 = vmatpush.xpose.msra.mxu0 0.0
    %296 = vmatpush.xpose.msra.mxu0 0.0
    %297 = vmatpush.xpose.msra.mxu0 0.0
    %298 = vmatpush.xpose.msra.mxu0 0.0
    %299 = vmatpush.xpose.msra.mxu0 0.0
    %300 = vmatpush.xpose.msra.mxu0 %v283
    %301 = vmatmul.f32.gmra.mxu0 %v281
    %v302 = vpop.f32.mrf.mxu0
    %v303 = vadd.f32 0.0, %v302
    %304 = vdwg.mxu0
    %v305 = vmul.f32 %v275, 0.35355338
    %v306 = vmul.f32 %v303, 0.35355338
    %v307 = vadd.f32 %v305, %v243
    %v308 = vadd.f32 %v306, %v243
    %v309 = vsel %vm251, %v307, -inf
    %310 = vmax.xlane.f32.xlu0 %v309
    %v311 = vpop.xlane.xlu0 %310
    %v312 = vsel %vm251, %v308, -inf
    %313 = vmax.xlane.f32.xlu0 %v312
    %v314 = vpop.xlane.xlu0 %313
    %v315 = vsub.f32 %v307, %v311
    %v316 = vsub.f32 %v308, %v314
    %v317 = vmul.f32 %v315, 1.442695
    %v318 = vpow.pop %v317
    %v319 = vmul.f32 %v316, 1.442695
    %v320 = vpow.pop %v319
    %v321 = vsel %vm251, %v318, 0.0
    %322 = vadd.xlane.f32.xlu0 %v321
    %v323 = vpop.xlane.xlu0 %322
    %v324 = vsel %vm251, %v320, 0.0
    %325 = vadd.xlane.f32.xlu0 %v324
    %v326 = vpop.xlane.xlu0 %325
    %v327 = vrcp.pop %v323
    %v328 = vrcp.pop %v326
    %v329 = vmul.f32 %v318, %v327
    %v330 = vmul.f32 %v320, %v328
    %332 = vrot.lane.b32.xlu0 %v166, 64
    %v333 = vpop.permute.xlu0 %332
    %v336 = vsel %vm251, %v329, 0
    %338 = vmatpush.msra.mxu0 0.0
    %339 = vmatpush.msra.mxu0 0.0
    %340 = vmatpush.msra.mxu0 0.0
    %341 = vmatpush.msra.mxu0 0.0
    %342 = vmatpush.msra.mxu0 0.0
    %343 = vmatpush.msra.mxu0 0.0
    %344 = vmatpush.msra.mxu0 0.0
    %345 = vmatpush.msra.mxu0 0.0
    %346 = vmatpush.msra.mxu0 0.0
    %347 = vmatpush.msra.mxu0 0.0
    %348 = vmatpush.msra.mxu0 0.0
    %349 = vmatpush.msra.mxu0 0.0
    %350 = vmatpush.msra.mxu0 0.0
    %351 = vmatpush.msra.mxu0 0.0
    %352 = vmatpush.msra.mxu0 0.0
    %353 = vmatpush.msra.mxu0 %v333
    %354 = vmatmul.f32.gmra.mxu0 %v336
    %v355 = vpop.f32.mrf.mxu0
    %v356 = vadd.f32 0.0, %v355
    %357 = vdwg.mxu0
    %359 = vrot.lane.b32.xlu0 %v169, 64
    %v360 = vpop.permute.xlu0 %359
    %v363 = vsel %vm251, %v330, 0
    %365 = vmatpush.msra.mxu0 0.0
    %366 = vmatpush.msra.mxu0 0.0
    %367 = vmatpush.msra.mxu0 0.0
    %368 = vmatpush.msra.mxu0 0.0
    %369 = vmatpush.msra.mxu0 0.0
    %370 = vmatpush.msra.mxu0 0.0
    %371 = vmatpush.msra.mxu0 0.0
    %372 = vmatpush.msra.mxu0 0.0
    %373 = vmatpush.msra.mxu0 0.0
    %374 = vmatpush.msra.mxu0 0.0
    %375 = vmatpush.msra.mxu0 0.0
    %376 = vmatpush.msra.mxu0 0.0
    %377 = vmatpush.msra.mxu0 0.0
    %378 = vmatpush.msra.mxu0 0.0
    %379 = vmatpush.msra.mxu0 0.0
    %380 = vmatpush.msra.mxu0 %v360
    %381 = vmatmul.f32.gmra.mxu0 %v363
    %v382 = vpop.f32.mrf.mxu0
    %v383 = vadd.f32 0.0, %v382
    %384 = vdwg.mxu0
    %385 = vrot.lane.b32.xlu0 %v214, 120
    %v386 = vpop.permute.xlu0 %385
    %387 = vrot.lane.b32.xlu0 %v236, 88
    %v388 = vpop.permute.xlu0 %387
    %v389 = vsel %vm251, %v386, 0
    %v391 = vsel %vm251, %v388, 0
    %393 = vmatpush.xpose.msra.mxu0 0.0
    %394 = vmatpush.xpose.msra.mxu0 0.0
    %395 = vmatpush.xpose.msra.mxu0 0.0
    %396 = vmatpush.xpose.msra.mxu0 0.0
    %397 = vmatpush.xpose.msra.mxu0 0.0
    %398 = vmatpush.xpose.msra.mxu0 0.0
    %399 = vmatpush.xpose.msra.mxu0 0.0
    %400 = vmatpush.xpose.msra.mxu0 0.0
    %401 = vmatpush.xpose.msra.mxu0 0.0
    %402 = vmatpush.xpose.msra.mxu0 0.0
    %403 = vmatpush.xpose.msra.mxu0 0.0
    %404 = vmatpush.xpose.msra.mxu0 0.0
    %405 = vmatpush.xpose.msra.mxu0 0.0
    %406 = vmatpush.xpose.msra.mxu0 0.0
    %407 = vmatpush.xpose.msra.mxu0 0.0
    %408 = vmatpush.xpose.msra.mxu0 %v391
    %409 = vmatmul.f32.gmra.mxu0 %v389
    %v410 = vpop.f32.mrf.mxu0
    %v411 = vadd.f32 0.0, %v410
    %412 = vdwg.mxu0
    %413 = vrot.lane.b32.xlu0 %v215, 120
    %v414 = vpop.permute.xlu0 %413
    %415 = vrot.lane.b32.xlu0 %v237, 88
    %v416 = vpop.permute.xlu0 %415
    %v417 = vsel %vm251, %v414, 0
    %v419 = vsel %vm251, %v416, 0
    %421 = vmatpush.xpose.msra.mxu0 0.0
    %422 = vmatpush.xpose.msra.mxu0 0.0
    %423 = vmatpush.xpose.msra.mxu0 0.0
    %424 = vmatpush.xpose.msra.mxu0 0.0
    %425 = vmatpush.xpose.msra.mxu0 0.0
    %426 = vmatpush.xpose.msra.mxu0 0.0
    %427 = vmatpush.xpose.msra.mxu0 0.0
    %428 = vmatpush.xpose.msra.mxu0 0.0
    %429 = vmatpush.xpose.msra.mxu0 0.0
    %430 = vmatpush.xpose.msra.mxu0 0.0
    %431 = vmatpush.xpose.msra.mxu0 0.0
    %432 = vmatpush.xpose.msra.mxu0 0.0
    %433 = vmatpush.xpose.msra.mxu0 0.0
    %434 = vmatpush.xpose.msra.mxu0 0.0
    %435 = vmatpush.xpose.msra.mxu0 0.0
    %436 = vmatpush.xpose.msra.mxu0 %v419
    %437 = vmatmul.f32.gmra.mxu0 %v417
    %v438 = vpop.f32.mrf.mxu0
    %v439 = vadd.f32 0.0, %v438
    %440 = vdwg.mxu0
    %v441 = vmul.f32 %v411, 0.35355338
    %v442 = vmul.f32 %v439, 0.35355338
    %v443 = vadd.f32 %v441, %v243
    %v444 = vadd.f32 %v442, %v243
    %v445 = vsel %vm251, %v443, -inf
    %446 = vmax.xlane.f32.xlu0 %v445
    %v447 = vpop.xlane.xlu0 %446
    %v448 = vsel %vm251, %v444, -inf
    %449 = vmax.xlane.f32.xlu0 %v448
    %v450 = vpop.xlane.xlu0 %449
    %v451 = vsub.f32 %v443, %v447
    %v452 = vsub.f32 %v444, %v450
    %v453 = vmul.f32 %v451, 1.442695
    %v454 = vpow.pop %v453
    %v455 = vmul.f32 %v452, 1.442695
    %v456 = vpow.pop %v455
    %v457 = vsel %vm251, %v454, 0.0
    %458 = vadd.xlane.f32.xlu0 %v457
    %v459 = vpop.xlane.xlu0 %458
    %v460 = vsel %vm251, %v456, 0.0
    %461 = vadd.xlane.f32.xlu0 %v460
    %v462 = vpop.xlane.xlu0 %461
    %v463 = vrcp.pop %v459
    %v464 = vrcp.pop %v462
    %v465 = vmul.f32 %v454, %v463
    %v466 = vmul.f32 %v456, %v464
    %467 = vrot.lane.b32.xlu0 %v166, 56
    %v468 = vpop.permute.xlu0 %467
    %v471 = vsel %vm251, %v465, 0
    %473 = vmatpush.msra.mxu0 0.0
    %474 = vmatpush.msra.mxu0 0.0
    %475 = vmatpush.msra.mxu0 0.0
    %476 = vmatpush.msra.mxu0 0.0
    %477 = vmatpush.msra.mxu0 0.0
    %478 = vmatpush.msra.mxu0 0.0
    %479 = vmatpush.msra.mxu0 0.0
    %480 = vmatpush.msra.mxu0 0.0
    %481 = vmatpush.msra.mxu0 0.0
    %482 = vmatpush.msra.mxu0 0.0
    %483 = vmatpush.msra.mxu0 0.0
    %484 = vmatpush.msra.mxu0 0.0
    %485 = vmatpush.msra.mxu0 0.0
    %486 = vmatpush.msra.mxu0 0.0
    %487 = vmatpush.msra.mxu0 0.0
    %488 = vmatpush.msra.mxu0 %v468
    %489 = vmatmul.f32.gmra.mxu0 %v471
    %v490 = vpop.f32.mrf.mxu0
    %v491 = vadd.f32 0.0, %v490
    %492 = vdwg.mxu0
    %493 = vrot.lane.b32.xlu0 %v169, 56
    %v494 = vpop.permute.xlu0 %493
    %v497 = vsel %vm251, %v466, 0
    %499 = vmatpush.msra.mxu0 0.0
    %500 = vmatpush.msra.mxu0 0.0
    %501 = vmatpush.msra.mxu0 0.0
    %502 = vmatpush.msra.mxu0 0.0
    %503 = vmatpush.msra.mxu0 0.0
    %504 = vmatpush.msra.mxu0 0.0
    %505 = vmatpush.msra.mxu0 0.0
    %506 = vmatpush.msra.mxu0 0.0
    %507 = vmatpush.msra.mxu0 0.0
    %508 = vmatpush.msra.mxu0 0.0
    %509 = vmatpush.msra.mxu0 0.0
    %510 = vmatpush.msra.mxu0 0.0
    %511 = vmatpush.msra.mxu0 0.0
    %512 = vmatpush.msra.mxu0 0.0
    %513 = vmatpush.msra.mxu0 0.0
    %514 = vmatpush.msra.mxu0 %v494
    %515 = vmatmul.f32.gmra.mxu0 %v497
    %v516 = vpop.f32.mrf.mxu0
    %v517 = vadd.f32 0.0, %v516
    %518 = vdwg.mxu0
    %v520 = vsel %vm251, %v491, 0
    %v523 = vsel %vm251, %v517, 0
    %525 = vmatpush.msra.mxu0 0.0
    %526 = vmatpush.msra.mxu0 0.0
    %527 = vmatpush.msra.mxu0 0.0
    %528 = vmatpush.msra.mxu0 0.0
    %529 = vmatpush.msra.mxu0 0.0
    %530 = vmatpush.msra.mxu0 0.0
    %531 = vmatpush.msra.mxu0 0.0
    %532 = vmatpush.msra.mxu0 0.0
    %533 = vmatpush.msra.mxu0 0.0
    %534 = vmatpush.msra.mxu0 0.0
    %535 = vmatpush.msra.mxu0 0.0
    %536 = vmatpush.msra.mxu0 0.0
    %537 = vmatpush.msra.mxu0 0.0
    %538 = vmatpush.msra.mxu0 0.0
    %539 = vmatpush.msra.mxu0 0.0
    %540 = vmatpush.msra.mxu0 %v245
    %541 = vmatmul.f32.gmra.mxu0 %v520
    %v542 = vpop.f32.mrf.mxu0
    %v543 = vadd.f32 0.0, %v542
    %544 = vmatmul.f32.gmra.mxu0 %v523
    %v545 = vpop.f32.mrf.mxu0
    %v546 = vadd.f32 0.0, %v545
    %547 = vdwg.mxu0
    %v549 = vsel %vm251, %v356, 0
    %v552 = vsel %vm251, %v383, 0
    %554 = vmatpush.msra.mxu0 0.0
    %555 = vmatpush.msra.mxu0 0.0
    %556 = vmatpush.msra.mxu0 0.0
    %557 = vmatpush.msra.mxu0 0.0
    %558 = vmatpush.msra.mxu0 0.0
    %559 = vmatpush.msra.mxu0 0.0
    %560 = vmatpush.msra.mxu0 0.0
    %561 = vmatpush.msra.mxu0 0.0
    %562 = vmatpush.msra.mxu0 0.0
    %563 = vmatpush.msra.mxu0 0.0
    %564 = vmatpush.msra.mxu0 0.0
    %565 = vmatpush.msra.mxu0 0.0
    %566 = vmatpush.msra.mxu0 0.0
    %567 = vmatpush.msra.mxu0 0.0
    %568 = vmatpush.msra.mxu0 0.0
    %569 = vmatpush.msra.mxu0 %v244
    %570 = vmatmul.f32.gmra.mxu0 %v549
    %v571 = vpop.f32.mrf.mxu0
    %v572 = vadd.f32 %v543, %v571
    %573 = vmatmul.f32.gmra.mxu0 %v552
    %v574 = vpop.f32.mrf.mxu0
    %v575 = vadd.f32 %v546, %v574
    %576 = vdwg.mxu0
    %577 = vrot.lane.b32.xlu0 %v214, 112
    %v578 = vpop.permute.xlu0 %577
    %579 = vrot.lane.b32.xlu0 %v236, 80
    %v580 = vpop.permute.xlu0 %579
    %v581 = vsel %vm251, %v578, 0
    %v583 = vsel %vm251, %v580, 0
    %585 = vmatpush.xpose.msra.mxu0 0.0
    %586 = vmatpush.xpose.msra.mxu0 0.0
    %587 = vmatpush.xpose.msra.mxu0 0.0
    %588 = vmatpush.xpose.msra.mxu0 0.0
    %589 = vmatpush.xpose.msra.mxu0 0.0
    %590 = vmatpush.xpose.msra.mxu0 0.0
    %591 = vmatpush.xpose.msra.mxu0 0.0
    %592 = vmatpush.xpose.msra.mxu0 0.0
    %593 = vmatpush.xpose.msra.mxu0 0.0
    %594 = vmatpush.xpose.msra.mxu0 0.0
    %595 = vmatpush.xpose.msra.mxu0 0.0
    %596 = vmatpush.xpose.msra.mxu0 0.0
    %597 = vmatpush.xpose.msra.mxu0 0.0
    %598 = vmatpush.xpose.msra.mxu0 0.0
    %599 = vmatpush.xpose.msra.mxu0 0.0
    %600 = vmatpush.xpose.msra.mxu0 %v583
    %601 = vmatmul.f32.gmra.mxu0 %v581
    %v602 = vpop.f32.mrf.mxu0
    %v603 = vadd.f32 0.0, %v602
    %604 = vdwg.mxu0
    %605 = vrot.lane.b32.xlu0 %v215, 112
    %v606 = vpop.permute.xlu0 %605
    %607 = vrot.lane.b32.xlu0 %v237, 80
    %v608 = vpop.permute.xlu0 %607
    %v609 = vsel %vm251, %v606, 0
    %v611 = vsel %vm251, %v608, 0
    %613 = vmatpush.xpose.msra.mxu0 0.0
    %614 = vmatpush.xpose.msra.mxu0 0.0
    %615 = vmatpush.xpose.msra.mxu0 0.0
    %616 = vmatpush.xpose.msra.mxu0 0.0
    %617 = vmatpush.xpose.msra.mxu0 0.0
    %618 = vmatpush.xpose.msra.mxu0 0.0
    %619 = vmatpush.xpose.msra.mxu0 0.0
    %620 = vmatpush.xpose.msra.mxu0 0.0
    %621 = vmatpush.xpose.msra.mxu0 0.0
    %622 = vmatpush.xpose.msra.mxu0 0.0
    %623 = vmatpush.xpose.msra.mxu0 0.0
    %624 = vmatpush.xpose.msra.mxu0 0.0
    %625 = vmatpush.xpose.msra.mxu0 0.0
    %626 = vmatpush.xpose.msra.mxu0 0.0
    %627 = vmatpush.xpose.msra.mxu0 0.0
    %628 = vmatpush.xpose.msra.mxu0 %v611
    %629 = vmatmul.f32.gmra.mxu0 %v609
    %v630 = vpop.f32.mrf.mxu0
    %v631 = vadd.f32 0.0, %v630
    %632 = vdwg.mxu0
    %v633 = vmul.f32 %v603, 0.35355338
    %v634 = vmul.f32 %v631, 0.35355338
    %v635 = vadd.f32 %v633, %v243
    %v636 = vadd.f32 %v634, %v243
    %v637 = vsel %vm251, %v635, -inf
    %638 = vmax.xlane.f32.xlu0 %v637
    %v639 = vpop.xlane.xlu0 %638
    %v640 = vsel %vm251, %v636, -inf
    %641 = vmax.xlane.f32.xlu0 %v640
    %v642 = vpop.xlane.xlu0 %641
    %v643 = vsub.f32 %v635, %v639
    %v644 = vsub.f32 %v636, %v642
    %v645 = vmul.f32 %v643, 1.442695
    %v646 = vpow.pop %v645
    %v647 = vmul.f32 %v644, 1.442695
    %v648 = vpow.pop %v647
    %v649 = vsel %vm251, %v646, 0.0
    %650 = vadd.xlane.f32.xlu0 %v649
    %v651 = vpop.xlane.xlu0 %650
    %v652 = vsel %vm251, %v648, 0.0
    %653 = vadd.xlane.f32.xlu0 %v652
    %v654 = vpop.xlane.xlu0 %653
    %v655 = vrcp.pop %v651
    %v656 = vrcp.pop %v654
    %v657 = vmul.f32 %v646, %v655
    %v658 = vmul.f32 %v648, %v656
    %659 = vrot.lane.b32.xlu0 %v166, 48
    %v660 = vpop.permute.xlu0 %659
    %v663 = vsel %vm251, %v657, 0
    %665 = vmatpush.msra.mxu0 0.0
    %666 = vmatpush.msra.mxu0 0.0
    %667 = vmatpush.msra.mxu0 0.0
    %668 = vmatpush.msra.mxu0 0.0
    %669 = vmatpush.msra.mxu0 0.0
    %670 = vmatpush.msra.mxu0 0.0
    %671 = vmatpush.msra.mxu0 0.0
    %672 = vmatpush.msra.mxu0 0.0
    %673 = vmatpush.msra.mxu0 0.0
    %674 = vmatpush.msra.mxu0 0.0
    %675 = vmatpush.msra.mxu0 0.0
    %676 = vmatpush.msra.mxu0 0.0
    %677 = vmatpush.msra.mxu0 0.0
    %678 = vmatpush.msra.mxu0 0.0
    %679 = vmatpush.msra.mxu0 0.0
    %680 = vmatpush.msra.mxu0 %v660
    %681 = vmatmul.f32.gmra.mxu0 %v663
    %v682 = vpop.f32.mrf.mxu0
    %v683 = vadd.f32 0.0, %v682
    %684 = vdwg.mxu0
    %685 = vrot.lane.b32.xlu0 %v169, 48
    %v686 = vpop.permute.xlu0 %685
    %v689 = vsel %vm251, %v658, 0
    %691 = vmatpush.msra.mxu0 0.0
    %692 = vmatpush.msra.mxu0 0.0
    %693 = vmatpush.msra.mxu0 0.0
    %694 = vmatpush.msra.mxu0 0.0
    %695 = vmatpush.msra.mxu0 0.0
    %696 = vmatpush.msra.mxu0 0.0
    %697 = vmatpush.msra.mxu0 0.0
    %698 = vmatpush.msra.mxu0 0.0
    %699 = vmatpush.msra.mxu0 0.0
    %700 = vmatpush.msra.mxu0 0.0
    %701 = vmatpush.msra.mxu0 0.0
    %702 = vmatpush.msra.mxu0 0.0
    %703 = vmatpush.msra.mxu0 0.0
    %704 = vmatpush.msra.mxu0 0.0
    %705 = vmatpush.msra.mxu0 0.0
    %706 = vmatpush.msra.mxu0 %v686
    %707 = vmatmul.f32.gmra.mxu0 %v689
    %v708 = vpop.f32.mrf.mxu0
    %v709 = vadd.f32 0.0, %v708
    %710 = vdwg.mxu0
    %v712 = vsel %vm251, %v683, 0
    %v715 = vsel %vm251, %v709, 0
    %717 = vmatpush.msra.mxu0 0.0
    %718 = vmatpush.msra.mxu0 0.0
    %719 = vmatpush.msra.mxu0 0.0
    %720 = vmatpush.msra.mxu0 0.0
    %721 = vmatpush.msra.mxu0 0.0
    %722 = vmatpush.msra.mxu0 0.0
    %723 = vmatpush.msra.mxu0 0.0
    %724 = vmatpush.msra.mxu0 0.0
    %725 = vmatpush.msra.mxu0 0.0
    %726 = vmatpush.msra.mxu0 0.0
    %727 = vmatpush.msra.mxu0 0.0
    %728 = vmatpush.msra.mxu0 0.0
    %729 = vmatpush.msra.mxu0 0.0
    %730 = vmatpush.msra.mxu0 0.0
    %731 = vmatpush.msra.mxu0 0.0
    %732 = vmatpush.msra.mxu0 %v246
    %733 = vmatmul.f32.gmra.mxu0 %v712
    %v734 = vpop.f32.mrf.mxu0
    %v735 = vadd.f32 0.0, %v734
    %736 = vmatmul.f32.gmra.mxu0 %v715
    %v737 = vpop.f32.mrf.mxu0
    %v738 = vadd.f32 0.0, %v737
    %739 = vdwg.mxu0
    %v740 = vadd.f32 %v572, %v735
    %v741 = vadd.f32 %v575, %v738
    %742 = vrot.lane.b32.xlu0 %v214, 104
    %v743 = vpop.permute.xlu0 %742
    %744 = vrot.lane.b32.xlu0 %v236, 72
    %v745 = vpop.permute.xlu0 %744
    %v746 = vsel %vm251, %v743, 0
    %v748 = vsel %vm251, %v745, 0
    %750 = vmatpush.xpose.msra.mxu0 0.0
    %751 = vmatpush.xpose.msra.mxu0 0.0
    %752 = vmatpush.xpose.msra.mxu0 0.0
    %753 = vmatpush.xpose.msra.mxu0 0.0
    %754 = vmatpush.xpose.msra.mxu0 0.0
    %755 = vmatpush.xpose.msra.mxu0 0.0
    %756 = vmatpush.xpose.msra.mxu0 0.0
    %757 = vmatpush.xpose.msra.mxu0 0.0
    %758 = vmatpush.xpose.msra.mxu0 0.0
    %759 = vmatpush.xpose.msra.mxu0 0.0
    %760 = vmatpush.xpose.msra.mxu0 0.0
    %761 = vmatpush.xpose.msra.mxu0 0.0
    %762 = vmatpush.xpose.msra.mxu0 0.0
    %763 = vmatpush.xpose.msra.mxu0 0.0
    %764 = vmatpush.xpose.msra.mxu0 0.0
    %765 = vmatpush.xpose.msra.mxu0 %v748
    %766 = vmatmul.f32.gmra.mxu0 %v746
    %v767 = vpop.f32.mrf.mxu0
    %v768 = vadd.f32 0.0, %v767
    %769 = vdwg.mxu0
    %770 = vrot.lane.b32.xlu0 %v215, 104
    %v771 = vpop.permute.xlu0 %770
    %772 = vrot.lane.b32.xlu0 %v237, 72
    %v773 = vpop.permute.xlu0 %772
    %v774 = vsel %vm251, %v771, 0
    %v776 = vsel %vm251, %v773, 0
    %778 = vmatpush.xpose.msra.mxu0 0.0
    %779 = vmatpush.xpose.msra.mxu0 0.0
    %780 = vmatpush.xpose.msra.mxu0 0.0
    %781 = vmatpush.xpose.msra.mxu0 0.0
    %782 = vmatpush.xpose.msra.mxu0 0.0
    %783 = vmatpush.xpose.msra.mxu0 0.0
    %784 = vmatpush.xpose.msra.mxu0 0.0
    %785 = vmatpush.xpose.msra.mxu0 0.0
    %786 = vmatpush.xpose.msra.mxu0 0.0
    %787 = vmatpush.xpose.msra.mxu0 0.0
    %788 = vmatpush.xpose.msra.mxu0 0.0
    %789 = vmatpush.xpose.msra.mxu0 0.0
    %790 = vmatpush.xpose.msra.mxu0 0.0
    %791 = vmatpush.xpose.msra.mxu0 0.0
    %792 = vmatpush.xpose.msra.mxu0 0.0
    %793 = vmatpush.xpose.msra.mxu0 %v776
    %794 = vmatmul.f32.gmra.mxu0 %v774
    %v795 = vpop.f32.mrf.mxu0
    %v796 = vadd.f32 0.0, %v795
    %797 = vdwg.mxu0
    %v798 = vmul.f32 %v768, 0.35355338
    %v799 = vmul.f32 %v796, 0.35355338
    %v800 = vadd.f32 %v798, %v243
    %v801 = vadd.f32 %v799, %v243
    %v802 = vsel %vm251, %v800, -inf
    %803 = vmax.xlane.f32.xlu0 %v802
    %v804 = vpop.xlane.xlu0 %803
    %v805 = vsel %vm251, %v801, -inf
    %806 = vmax.xlane.f32.xlu0 %v805
    %v807 = vpop.xlane.xlu0 %806
    %v808 = vsub.f32 %v800, %v804
    %v809 = vsub.f32 %v801, %v807
    %v810 = vmul.f32 %v808, 1.442695
    %v811 = vpow.pop %v810
    %v812 = vmul.f32 %v809, 1.442695
    %v813 = vpow.pop %v812
    %v814 = vsel %vm251, %v811, 0.0
    %815 = vadd.xlane.f32.xlu0 %v814
    %v816 = vpop.xlane.xlu0 %815
    %v817 = vsel %vm251, %v813, 0.0
    %818 = vadd.xlane.f32.xlu0 %v817
    %v819 = vpop.xlane.xlu0 %818
    %v820 = vrcp.pop %v816
    %v821 = vrcp.pop %v819
    %v822 = vmul.f32 %v811, %v820
    %v823 = vmul.f32 %v813, %v821
    %824 = vrot.lane.b32.xlu0 %v166, 40
    %v825 = vpop.permute.xlu0 %824
    %v828 = vsel %vm251, %v822, 0
    %830 = vmatpush.msra.mxu0 0.0
    %831 = vmatpush.msra.mxu0 0.0
    %832 = vmatpush.msra.mxu0 0.0
    %833 = vmatpush.msra.mxu0 0.0
    %834 = vmatpush.msra.mxu0 0.0
    %835 = vmatpush.msra.mxu0 0.0
    %836 = vmatpush.msra.mxu0 0.0
    %837 = vmatpush.msra.mxu0 0.0
    %838 = vmatpush.msra.mxu0 0.0
    %839 = vmatpush.msra.mxu0 0.0
    %840 = vmatpush.msra.mxu0 0.0
    %841 = vmatpush.msra.mxu0 0.0
    %842 = vmatpush.msra.mxu0 0.0
    %843 = vmatpush.msra.mxu0 0.0
    %844 = vmatpush.msra.mxu0 0.0
    %845 = vmatpush.msra.mxu0 %v825
    %846 = vmatmul.f32.gmra.mxu0 %v828
    %v847 = vpop.f32.mrf.mxu0
    %v848 = vadd.f32 0.0, %v847
    %849 = vdwg.mxu0
    %850 = vrot.lane.b32.xlu0 %v169, 40
    %v851 = vpop.permute.xlu0 %850
    %v854 = vsel %vm251, %v823, 0
    %856 = vmatpush.msra.mxu0 0.0
    %857 = vmatpush.msra.mxu0 0.0
    %858 = vmatpush.msra.mxu0 0.0
    %859 = vmatpush.msra.mxu0 0.0
    %860 = vmatpush.msra.mxu0 0.0
    %861 = vmatpush.msra.mxu0 0.0
    %862 = vmatpush.msra.mxu0 0.0
    %863 = vmatpush.msra.mxu0 0.0
    %864 = vmatpush.msra.mxu0 0.0
    %865 = vmatpush.msra.mxu0 0.0
    %866 = vmatpush.msra.mxu0 0.0
    %867 = vmatpush.msra.mxu0 0.0
    %868 = vmatpush.msra.mxu0 0.0
    %869 = vmatpush.msra.mxu0 0.0
    %870 = vmatpush.msra.mxu0 0.0
    %871 = vmatpush.msra.mxu0 %v851
    %872 = vmatmul.f32.gmra.mxu0 %v854
    %v873 = vpop.f32.mrf.mxu0
    %v874 = vadd.f32 0.0, %v873
    %875 = vdwg.mxu0
    %v877 = vsel %vm251, %v848, 0
    %v880 = vsel %vm251, %v874, 0
    %882 = vmatpush.msra.mxu0 0.0
    %883 = vmatpush.msra.mxu0 0.0
    %884 = vmatpush.msra.mxu0 0.0
    %885 = vmatpush.msra.mxu0 0.0
    %886 = vmatpush.msra.mxu0 0.0
    %887 = vmatpush.msra.mxu0 0.0
    %888 = vmatpush.msra.mxu0 0.0
    %889 = vmatpush.msra.mxu0 0.0
    %890 = vmatpush.msra.mxu0 0.0
    %891 = vmatpush.msra.mxu0 0.0
    %892 = vmatpush.msra.mxu0 0.0
    %893 = vmatpush.msra.mxu0 0.0
    %894 = vmatpush.msra.mxu0 0.0
    %895 = vmatpush.msra.mxu0 0.0
    %896 = vmatpush.msra.mxu0 0.0
    %897 = vmatpush.msra.mxu0 %v247
    %898 = vmatmul.f32.gmra.mxu0 %v877
    %v899 = vpop.f32.mrf.mxu0
    %v900 = vadd.f32 0.0, %v899
    %901 = vmatmul.f32.gmra.mxu0 %v880
    %v902 = vpop.f32.mrf.mxu0
    %v903 = vadd.f32 0.0, %v902
    %904 = vdwg.mxu0
    %v905 = vadd.f32 %v740, %v900
    %v906 = vadd.f32 %v741, %v903
    %v907 = vadd.f32 %v80, %v905
    %v908 = vadd.f32 %v81, %v906
    %v909 = vld [vmem:[%s4] sm:$0x1]
    %v910 = vmul.f32 %v907, %v907
    %v911 = vmul.f32 %v908, %v908
    %v912 = vsel %vm89, %v910, 0.0
    %913 = vadd.xlane.f32.xlu0 %v912
    %v914 = vpop.xlane.xlu0 %913
    %v915 = vsel %vm89, %v911, 0.0
    %916 = vadd.xlane.f32.xlu0 %v915
    %v917 = vpop.xlane.xlu0 %916
    %v918 = vmul.f32 %v914, %v102
    %v919 = vmul.f32 %v917, %v102
    %v920 = vadd.f32 %v918, 1e-05
    %v921 = vadd.f32 %v919, 1e-05
    %v922 = vrsqrt.pop %v920
    %v923 = vmul.f32 %v922, %v920
    %v924 = vmul.f32 %v923, %v922
    %v925 = vmul.f32 0.5, %v924
    %v926 = vsub.f32 1.5, %v925
    %v927 = vmul.f32 %v922, %v926
    %vm928 = vweird.f32 %v920
    %vm929 = vweird.f32 %v922
    %vm930 = vmor %vm928, %vm929
    %v931 = vsel %vm930, %v922, %v927
    %v932 = vrsqrt.pop %v921
    %v933 = vmul.f32 %v932, %v921
    %v934 = vmul.f32 %v933, %v932
    %v935 = vmul.f32 0.5, %v934
    %v936 = vsub.f32 1.5, %v935
    %v937 = vmul.f32 %v932, %v936
    %vm938 = vweird.f32 %v921
    %vm939 = vweird.f32 %v932
    %vm940 = vmor %vm938, %vm939
    %v941 = vsel %vm940, %v932, %v937
    %v942 = vmul.f32 %v907, %v931
    %v943 = vmul.f32 %v908, %v941
    %v945 = vperm.slane %v909, 0
    %v947 = vmul.f32 %v942, %v945
    %v948 = vmul.f32 %v943, %v945
    %v949 = vld [vmem:[%s7] sm:$0xff]
    %v950 = vld [vmem:[%s7 + $0x8] sm:$0xff]
    %v951 = vld [vmem:[%s7 + $0x10] sm:$0xff]
    %v952 = vld [vmem:[%s7 + $0x18] sm:$0xff]
    %v953 = vld [vmem:[%s7 + $0x20] sm:$0xff]
    %v954 = vld [vmem:[%s7 + $0x28] sm:$0xff]
    %v955 = vld [vmem:[%s7 + $0x30] sm:$0xff]
    %v956 = vld [vmem:[%s7 + $0x38] sm:$0xff]
    %v958 = vsel %vm89, %v947, 0
    %v961 = vsel %vm89, %v948, 0
    %963 = vmatpush.msra.mxu0 0.0
    %964 = vmatpush.msra.mxu0 0.0
    %965 = vmatpush.msra.mxu0 0.0
    %966 = vmatpush.msra.mxu0 0.0
    %967 = vmatpush.msra.mxu0 0.0
    %968 = vmatpush.msra.mxu0 0.0
    %969 = vmatpush.msra.mxu0 0.0
    %970 = vmatpush.msra.mxu0 0.0
    %971 = vmatpush.msra.mxu0 0.0
    %972 = vmatpush.msra.mxu0 0.0
    %973 = vmatpush.msra.mxu0 0.0
    %974 = vmatpush.msra.mxu0 0.0
    %975 = vmatpush.msra.mxu0 %v955
    %976 = vmatpush.msra.mxu0 %v953
    %977 = vmatpush.msra.mxu0 %v951
    %978 = vmatpush.msra.mxu0 %v949
    %979 = vmatmul.f32.gmra.mxu0 %v958
    %v980 = vpop.f32.mrf.mxu0
    %v981 = vadd.f32 0.0, %v980
    %982 = vmatmul.f32.gmra.mxu0 %v961
    %v983 = vpop.f32.mrf.mxu0
    %v984 = vadd.f32 0.0, %v983
    %985 = vdwg.mxu0
    %986 = vmatpush.msra.mxu0 0.0
    %987 = vmatpush.msra.mxu0 0.0
    %988 = vmatpush.msra.mxu0 0.0
    %989 = vmatpush.msra.mxu0 0.0
    %990 = vmatpush.msra.mxu0 0.0
    %991 = vmatpush.msra.mxu0 0.0
    %992 = vmatpush.msra.mxu0 0.0
    %993 = vmatpush.msra.mxu0 0.0
    %994 = vmatpush.msra.mxu0 0.0
    %995 = vmatpush.msra.mxu0 0.0
    %996 = vmatpush.msra.mxu0 0.0
    %997 = vmatpush.msra.mxu0 0.0
    %998 = vmatpush.msra.mxu0 %v956
    %999 = vmatpush.msra.mxu0 %v954
    %1000 = vmatpush.msra.mxu0 %v952
    %1001 = vmatpush.msra.mxu0 %v950
    %1002 = vmatmul.f32.gmra.mxu0 %v958
    %v1003 = vpop.f32.mrf.mxu0
    %v1004 = vadd.f32 0.0, %v1003
    %1005 = vmatmul.f32.gmra.mxu0 %v961
    %v1006 = vpop.f32.mrf.mxu0
    %v1007 = vadd.f32 0.0, %v1006
    %1008 = vdwg.mxu0
    %v1009 = vsub.f32 0.0, %v981
    %v1010 = vsub.f32 0.0, %v984
    %v1011 = vmul.f32 %v1009, 1.442695
    %v1012 = vpow.pop %v1011
    %v1013 = vmul.f32 %v1010, 1.442695
    %v1014 = vpow.pop %v1013
    %v1015 = vadd.f32 %v1012, 1.0
    %v1016 = vadd.f32 %v1014, 1.0
    %v1017 = vrcp.pop %v1015
    %v1018 = vrcp.pop %v1016
    %v1019 = vmul.f32 %v981, %v1017
    %v1020 = vmul.f32 %v984, %v1018
    %v1021 = vmul.f32 %v1019, %v1004
    %v1022 = vmul.f32 %v1020, %v1007
    %v1023 = vld [vmem:[%s8] sm:$0xff]
    %v1024 = vld [vmem:[%s8 + $0x8] sm:$0xff]
    %v1025 = vld [vmem:[%s8 + $0x10] sm:$0xff]
    %v1026 = vld [vmem:[%s8 + $0x18] sm:$0xff]
    %v1027 = vld [vmem:[%s8 + $0x20] sm:$0xff]
    %v1028 = vld [vmem:[%s8 + $0x28] sm:$0xff]
    %v1029 = vld [vmem:[%s8 + $0x30] sm:$0xff]
    %v1030 = vld [vmem:[%s8 + $0x38] sm:$0xff]
    %v1031 = vld [vmem:[%s8 + $0x40] sm:$0xff]
    %v1032 = vld [vmem:[%s8 + $0x48] sm:$0xff]
    %v1033 = vld [vmem:[%s8 + $0x50] sm:$0xff]
    %v1034 = vld [vmem:[%s8 + $0x58] sm:$0xff]
    %v1035 = vld [vmem:[%s8 + $0x60] sm:$0xff]
    %v1036 = vld [vmem:[%s8 + $0x68] sm:$0xff]
    %v1037 = vld [vmem:[%s8 + $0x70] sm:$0xff]
    %v1038 = vld [vmem:[%s8 + $0x78] sm:$0xff]
    %1039 = vmatpush.msra.mxu0 %v1038
    %1040 = vmatpush.msra.mxu0 %v1037
    %1041 = vmatpush.msra.mxu0 %v1036
    %1042 = vmatpush.msra.mxu0 %v1035
    %1043 = vmatpush.msra.mxu0 %v1034
    %1044 = vmatpush.msra.mxu0 %v1033
    %1045 = vmatpush.msra.mxu0 %v1032
    %1046 = vmatpush.msra.mxu0 %v1031
    %1047 = vmatpush.msra.mxu0 %v1030
    %1048 = vmatpush.msra.mxu0 %v1029
    %1049 = vmatpush.msra.mxu0 %v1028
    %1050 = vmatpush.msra.mxu0 %v1027
    %1051 = vmatpush.msra.mxu0 %v1026
    %1052 = vmatpush.msra.mxu0 %v1025
    %1053 = vmatpush.msra.mxu0 %v1024
    %1054 = vmatpush.msra.mxu0 %v1023
    %1055 = vmatmul.f32.gmra.mxu0 %v1021
    %v1056 = vpop.f32.mrf.mxu0
    %v1057 = vadd.f32 0.0, %v1056
    %1058 = vmatmul.f32.gmra.mxu0 %v1022
    %v1059 = vpop.f32.mrf.mxu0
    %v1060 = vadd.f32 0.0, %v1059
    %1061 = vdwg.mxu0
    %v1062 = vadd.f32 %v907, %v1057
    %v1063 = vadd.f32 %v908, %v1060
    %1064 = vst.msk [vmem:[#allocation8] sm:$0xff] %vm89, %v1062
    %1065 = vst.msk [vmem:[#allocation8 + $0x8] sm:$0xff] %vm89, %v1063
    // Predicated region
    $region50: #{tpu_custom_call.1} parent=1 // pred_check
      _
    $region51: #{tpu_custom_call.1} parent=1 // pred_check_branch
      %1067 = sbr.rel (0) target = $region53
    $region52: #{tpu_custom_call.1} parent=1 // pred_region
      %1069 = vsyncadd [#allocation4], 0
      %s1070 = sshll.u32 [#allocation8], 4
      %s1071 = int_to_ptr.vmem [resolvable:$true] %s1070
      %s1072 = sshll.u32 %s9, 4
      %s1073 = int_to_ptr.hbm [resolvable:$true] %s1072
      %1078 = dma.vmem_to_hbm [thread:$0]  %s1071, 256, %s1073, [#allocation4], 128, 128, 8
    $region53: #{tpu_custom_call.1} parent=1 // pred_fallthru
      _
    // Predicated region
    $region54: #{tpu_custom_call.1} parent=1 // pred_check
      _
    $region55: #{tpu_custom_call.1} parent=1 // pred_check_branch
      %1080 = sbr.rel (0) target = $region57
    $region56: #{tpu_custom_call.1} parent=1 // pred_region
      %1082 = dma.done [#allocation4], 256
    $region57: #{tpu_custom_call.1} parent=1 // pred_fallthru
      _
    %1083 = vsyncpa [#allocation3], 1
    %1084 = vsyncpa [#allocation6], 1
    %1085 = vsyncpa [#allocation4], 1

</llo_original>
